<compile_context>
chip_gen: v7x
topology: tpu7x:2x2x1
jax: 0.10.0
libtpu: 0.0.40
codegen_flags: <defaults>
</compile_context>

<pallas_src>
import functools

import jax
import jax.numpy as jnp
from jax.experimental import pallas as pl
from jax.experimental.pallas import tpu as pltpu


def mlp_kernel(x_ref, w1_ref, b1_ref, w2_ref, b2_ref, o_ref):
    # hidden = relu(x @ W1 + b1)   (bf16 x bf16 -> f32 accumulate on the MXU)
    h = jnp.dot(x_ref[...], w1_ref[...], preferred_element_type=jnp.float32)
    h = jnp.maximum(h + b1_ref[...], 0.0)          # bias add / ReLU in f32
    # out = hidden @ W2 + b2       (re-pack hidden to bf16 for the MXU)
    o = jnp.dot(h.astype(w2_ref.dtype), w2_ref[...],
                preferred_element_type=jnp.float32)
    o_ref[...] = (o + b2_ref[...]).astype(o_ref.dtype)


def _round_up(n, m):
    return ((n + m - 1) // m) * m


@functools.partial(jax.jit, static_argnames=("tile_b",))
def mlp_forward(x, w1, b1, w2, b2, *, tile_b=512):
    """y = relu(x @ w1 + b1) @ w2 + b2, computed with a Pallas TPU kernel.

    x: (B, 20) f32, w1: (20, 256), b1: (256,), w2: (256, 10), b2: (10,).
    """
    B, D_in = x.shape
    D_hid = w1.shape[1]
    D_out = w2.shape[1]
    compute_dtype = jnp.bfloat16

    # Lane-dense output features: pad 10 -> 128 (multiple of 128).
    D_out_p = _round_up(max(D_out, 128), 128)
    # Batch tile: multiple of 16 sublanes (bf16 packing), capped at tile_b.
    TB = min(tile_b, _round_up(B, 16))
    B_pad = _round_up(B, TB)

    # Wrapper-side padding / dtype casts (done once, outside the grid loop).
    x_p = jnp.zeros((B_pad, D_in), compute_dtype).at[:B].set(
        x.astype(compute_dtype))
    w1_c = w1.astype(compute_dtype)
    w2_p = jnp.zeros((D_hid, D_out_p), compute_dtype).at[:, :D_out].set(
        w2.astype(compute_dtype))
    b1_2d = b1.reshape(1, D_hid).astype(jnp.float32)
    b2_p = jnp.zeros((1, D_out_p), jnp.float32).at[:, :D_out].set(
        b2.astype(jnp.float32))

    grid = (pl.cdiv(B_pad, TB),)

    out_padded = pl.pallas_call(
        mlp_kernel,
        out_shape=jax.ShapeDtypeStruct((B_pad, D_out_p), jnp.float32),
        grid=grid,
        in_specs=[
            pl.BlockSpec((TB, D_in), lambda i: (i, 0)),        # x: batch-tiled
            pl.BlockSpec((D_in, D_hid), lambda i: (0, 0)),      # W1: resident
            pl.BlockSpec((1, D_hid), lambda i: (0, 0)),         # b1: resident
            pl.BlockSpec((D_hid, D_out_p), lambda i: (0, 0)),   # W2: resident
            pl.BlockSpec((1, D_out_p), lambda i: (0, 0)),       # b2: resident
        ],
        out_specs=pl.BlockSpec((TB, D_out_p), lambda i: (i, 0)),
        compiler_params=pltpu.CompilerParams(
            dimension_semantics=("parallel",),                  # v7x: 2 TCs
        ),
    )(x_p, w1_c, b1_2d, w2_p, b2_p)

    return out_padded[:B, :D_out]


def _reference_f32(x, w1, b1, w2, b2):
    return jnp.maximum(x @ w1 + b1, 0.0) @ w2 + b2


def _reference_bf16_matched(x, w1, b1, w2, b2):
    # Same bf16 rounding of the MXU operands as the kernel, f32 accumulation.
    f32 = jnp.float32
    xb = x.astype(jnp.bfloat16).astype(f32)
    w1b = w1.astype(jnp.bfloat16).astype(f32)
    w2b = w2.astype(jnp.bfloat16).astype(f32)
    h = jnp.maximum(xb @ w1b + b1, 0.0)
    return h.astype(jnp.bfloat16).astype(f32) @ w2b + b2


if __name__ == "__main__":
    key = jax.random.PRNGKey(0)
    k_x, k_w1, k_b1, k_w2, k_b2, k_xl = jax.random.split(key, 6)

    B, D_in, D_hid, D_out = 2, 20, 256, 10

    # Deterministic synthetic parameters (PyTorch nn.Linear-like uniform init).
    x = jax.random.normal(k_x, (B, D_in), dtype=jnp.float32)
    lim1 = 1.0 / (D_in ** 0.5)
    w1 = jax.random.uniform(k_w1, (D_in, D_hid), jnp.float32, -lim1, lim1)
    b1 = jax.random.uniform(k_b1, (D_hid,), jnp.float32, -lim1, lim1)
    lim2 = 1.0 / (D_hid ** 0.5)
    w2 = jax.random.uniform(k_w2, (D_hid, D_out), jnp.float32, -lim2, lim2)
    b2 = jax.random.uniform(k_b2, (D_out,), jnp.float32, -lim2, lim2)

    # Small run (spec-sized batch).
    out = mlp_forward(x, w1, b1, w2, b2)
    jax.block_until_ready(out)
    assert out.shape == (B, D_out)
    assert jnp.allclose(out, _reference_bf16_matched(x, w1, b1, w2, b2),
                        atol=1e-3, rtol=1e-3)
    assert jnp.allclose(out, _reference_f32(x, w1, b1, w2, b2),
                        atol=5e-2, rtol=5e-2)

    # Larger batch to exercise the tiled (grid > 1, ragged) path.
    BL = 640
    xl = jax.random.normal(k_xl, (BL, D_in), dtype=jnp.float32)
    out_l = mlp_forward(xl, w1, b1, w2, b2)
    jax.block_until_ready(out_l)
    assert out_l.shape == (BL, D_out)
    assert jnp.allclose(out_l, _reference_bf16_matched(xl, w1, b1, w2, b2),
                        atol=1e-3, rtol=1e-3)
    assert jnp.allclose(out_l, _reference_f32(xl, w1, b1, w2, b2),
                        atol=5e-2, rtol=5e-2)

    print("KERNEL_OK")
</pallas_src>

<mosaic_0001>
module attributes {stable_mosaic.version = 11 : i64} {
  func.func @mlp_kernel(%arg0: i32, %arg1: memref<16x20xbf16, #tpu.memory_space<vmem>>, %arg2: memref<20x256xbf16, #tpu.memory_space<vmem>>, %arg3: memref<1x256xf32, #tpu.memory_space<vmem>>, %arg4: memref<256x128xbf16, #tpu.memory_space<vmem>>, %arg5: memref<1x128xf32, #tpu.memory_space<vmem>>, %arg6: memref<16x128xf32, #tpu.memory_space<vmem>>) attributes {dimension_semantics = [#tpu.dimension_semantics<parallel>], iteration_bounds = array<i64: 1>, scalar_prefetch = 0 : i64, scratch_operands = 0 : i64, tpu.core_type = #tpu.core_type<tc>, window_params = [{transform_indices = @transform_0, window_bounds = array<i64: 16, 20>}, {pipeline_mode = #tpu.pipeline_mode<synchronous>, transform_indices = @transform_1, window_bounds = array<i64: 20, 256>}, {pipeline_mode = #tpu.pipeline_mode<synchronous>, transform_indices = @transform_2, window_bounds = array<i64: 1, 256>}, {pipeline_mode = #tpu.pipeline_mode<synchronous>, transform_indices = @transform_3, window_bounds = array<i64: 256, 128>}, {pipeline_mode = #tpu.pipeline_mode<synchronous>, transform_indices = @transform_4, window_bounds = array<i64: 1, 128>}, {transform_indices = @transform_5, window_bounds = array<i64: 16, 128>}]} {
    %c0 = arith.constant 0 : index
    %c0_0 = arith.constant 0 : index
    %0 = vector.load %arg1[%c0, %c0_0] : memref<16x20xbf16, #tpu.memory_space<vmem>>, vector<16x20xbf16>
    %c0_1 = arith.constant 0 : index
    %c0_2 = arith.constant 0 : index
    %1 = vector.load %arg2[%c0_1, %c0_2] : memref<20x256xbf16, #tpu.memory_space<vmem>>, vector<20x256xbf16>
    %cst = arith.constant dense<0.000000e+00> : vector<16x256xf32>
    %2 = tpu.matmul %0, %1, %cst {dimension_numbers = #tpu.dot_dimension_numbers<[1], [0], [0], [1], [0, 0, 1, 1], [], []>} : vector<16x20xbf16>, vector<20x256xbf16>, vector<16x256xf32> -> vector<16x256xf32>
    %c0_3 = arith.constant 0 : index
    %c0_4 = arith.constant 0 : index
    %3 = vector.load %arg3[%c0_3, %c0_4] : memref<1x256xf32, #tpu.memory_space<vmem>>, vector<1x256xf32>
    %4 = vector.broadcast %3 : vector<1x256xf32> to vector<16x256xf32>
    %5 = arith.addf %2, %4 : vector<16x256xf32>
    %cst_5 = arith.constant 0.000000e+00 : f32
    %6 = vector.broadcast %cst_5 : f32 to vector<16x256xf32>
    %7 = arith.maximumf %5, %6 : vector<16x256xf32>
    %8 = arith.truncf %7 : vector<16x256xf32> to vector<16x256xbf16>
    %c0_6 = arith.constant 0 : index
    %c0_7 = arith.constant 0 : index
    %9 = vector.load %arg4[%c0_6, %c0_7] : memref<256x128xbf16, #tpu.memory_space<vmem>>, vector<256x128xbf16>
    %cst_8 = arith.constant dense<0.000000e+00> : vector<16x128xf32>
    %10 = tpu.matmul %8, %9, %cst_8 {dimension_numbers = #tpu.dot_dimension_numbers<[1], [0], [0], [1], [0, 0, 1, 1], [], []>} : vector<16x256xbf16>, vector<256x128xbf16>, vector<16x128xf32> -> vector<16x128xf32>
    %c0_9 = arith.constant 0 : index
    %c0_10 = arith.constant 0 : index
    %11 = vector.load %arg5[%c0_9, %c0_10] : memref<1x128xf32, #tpu.memory_space<vmem>>, vector<1x128xf32>
    %12 = vector.broadcast %11 : vector<1x128xf32> to vector<16x128xf32>
    %13 = arith.addf %10, %12 : vector<16x128xf32>
    %c0_11 = arith.constant 0 : index
    %c0_12 = arith.constant 0 : index
    %14 = vector.load %arg6[%c0_11, %c0_12] : memref<16x128xf32, #tpu.memory_space<vmem>>, vector<16x128xf32>
    tpu.vector_store %arg6[%c0_11, %c0_12], %13 {strides = array<i32>} : memref<16x128xf32, #tpu.memory_space<vmem>>, vector<16x128xf32>,
    return
  }
  func.func @transform_0(%arg0: i32) -> (i32, i32) {
    %c0_i32 = arith.constant 0 : i32
    %c0_i32_0 = arith.constant 0 : i32
    return %arg0, %c0_i32 : i32, i32
  }
  func.func @transform_1(%arg0: i32) -> (i32, i32) {
    %c0_i32 = arith.constant 0 : i32
    %c0_i32_0 = arith.constant 0 : i32
    %c0_i32_1 = arith.constant 0 : i32
    return %c0_i32, %c0_i32_0 : i32, i32
  }
  func.func @transform_2(%arg0: i32) -> (i32, i32) {
    %c0_i32 = arith.constant 0 : i32
    %c0_i32_0 = arith.constant 0 : i32
    %c0_i32_1 = arith.constant 0 : i32
    return %c0_i32, %c0_i32_0 : i32, i32
  }
  func.func @transform_3(%arg0: i32) -> (i32, i32) {
    %c0_i32 = arith.constant 0 : i32
    %c0_i32_0 = arith.constant 0 : i32
    %c0_i32_1 = arith.constant 0 : i32
    return %c0_i32, %c0_i32_0 : i32, i32
  }
  func.func @transform_4(%arg0: i32) -> (i32, i32) {
    %c0_i32 = arith.constant 0 : i32
    %c0_i32_0 = arith.constant 0 : i32
    %c0_i32_1 = arith.constant 0 : i32
    return %c0_i32, %c0_i32_0 : i32, i32
  }
  func.func @transform_5(%arg0: i32) -> (i32, i32) {
    %c0_i32 = arith.constant 0 : i32
    %c0_i32_0 = arith.constant 0 : i32
    return %arg0, %c0_i32 : i32, i32
  }
}

</mosaic_0001>

<llo_original>
// kernel: mlp_forward.1
$region0: #{mlp_forward.1}
  #allocation0 [shape = 'u32[]', space=smem, size = 0x4, offset = 0x4, fixed_abs, tag = 'smem constant byte address 0x4 - core index']
  #allocation1 [shape = 'u32[144,128]{1,0:T(1,128)}', space=vmem, size = 0x12000, scoped, tag = 'internal scratch']
  %s0 = inlined_call_operand.vmem [shape: bf16[16,20], index: 0, kind: input, shape index: {}]
  %s1 = inlined_call_operand.vmem [shape: bf16[20,256], index: 1, kind: input, shape index: {}]
  %s2 = inlined_call_operand.vmem [shape: f32[1,256], index: 2, kind: input, shape index: {}]
  %s3 = inlined_call_operand.vmem [shape: bf16[256,128], index: 3, kind: input, shape index: {}]
  %s4 = inlined_call_operand.vmem [shape: f32[1,128], index: 4, kind: input, shape index: {}]
  %s5 = inlined_call_operand.vmem [shape: f32[16,128], index: 5, kind: output, shape index: {}]
  %s6 = sld [smem:[#allocation0]]
  $region30: #{mlp_forward.1} parent=0
    _
  %s8 = ssub.s32 1, %s6
  %s9 = scalar_select 0, %s8, %s6
  // Predicated region
  $region2: #{mlp_forward.1} parent=0 // pred_check
    _
  $region3: #{mlp_forward.1} parent=0 // pred_check_branch
    %11 = sbr.rel (0) target = $region5
  $region4: #{mlp_forward.1} parent=0 // pred_region
    _
  $region5: #{mlp_forward.1} parent=0 // pred_fallthru
    _
  // Predicated region
  $region6: #{mlp_forward.1} parent=0 // pred_check
    _
  $region7: #{mlp_forward.1} parent=0 // pred_check_branch
    %13 = sbr.rel (0) target = $region9
  $region8: #{mlp_forward.1} parent=0 // pred_region
    _
  $region9: #{mlp_forward.1} parent=0 // pred_fallthru
    _
  // Predicated region
  $region10: #{mlp_forward.1} parent=0 // pred_check
    _
  $region11: #{mlp_forward.1} parent=0 // pred_check_branch
    %15 = sbr.rel (0) target = $region13
  $region12: #{mlp_forward.1} parent=0 // pred_region
    _
  $region13: #{mlp_forward.1} parent=0 // pred_fallthru
    _
  // Predicated region
  $region14: #{mlp_forward.1} parent=0 // pred_check
    _
  $region15: #{mlp_forward.1} parent=0 // pred_check_branch
    %17 = sbr.rel (0) target = $region17
  $region16: #{mlp_forward.1} parent=0 // pred_region
    _
  $region17: #{mlp_forward.1} parent=0 // pred_fallthru
    _
  // Predicated region
  $region18: #{mlp_forward.1} parent=0 // pred_check
    _
  $region19: #{mlp_forward.1} parent=0 // pred_check_branch
    %19 = sbr.rel (0) target = $region21
  $region20: #{mlp_forward.1} parent=0 // pred_region
    _
  $region21: #{mlp_forward.1} parent=0 // pred_fallthru
    _
  %v21 = vld [vmem:[%s0] sm:$0xf]
  %v22 = vld [vmem:[%s0 + $0x4] sm:$0xf]
  %v23 = vld [vmem:[%s1] sm:$0xff]
  %v24 = vld [vmem:[%s1 + $0x8] sm:$0xff]
  %v25 = vld [vmem:[%s1 + $0x10] sm:$0x33]
  %v26 = vld [vmem:[%s2] sm:$0x3]
  %v28 = vlaneseq
  %v29 = vshrl.u32 %v28, 7
  %v30 = vsub.s32 0, %v29
  %v31 = vrot.slane %v26, %v30
  %v32 = vlaneseq
  %v33 = vshrl.u32 %v32, 7
  %v34 = vsub.s32 1, %v33
  %v35 = vrot.slane %v26, %v34
  %v40 = vunpack.c.l.b16 %v21
  %v41 = vunpack.c.l.b16 %v22
  %v42 = vpack.c.b16 %v41, %v40
  %v46 = vunpack.c.l.b16 %v23
  %v47 = vunpack.c.h.b16 %v23
  %v48 = vunpack.c.l.b16 %v24
  %v49 = vunpack.c.h.b16 %v24
  %v50 = vunpack.c.l.b16 %v25
  %v51 = vunpack.c.h.b16 %v25
  %v52 = vpack.c.b16 %v48, %v46
  %v53 = vpack.c.b16 %v49, %v47
  %v54 = vpack.c.b16 %v50, %v50
  %v55 = vpack.c.b16 %v51, %v51
  %vm58 = vcmask 162816
  %v60 = vsel %vm58, %v42, 0
  %vm62 = vcmask 1041408
  %v64 = vsel %vm62, %v54, 0
  %v67 = vsel %vm62, %v55, 0
  %69 = vmatprep.subr.bf16.mxu0 %v53
  %70 = vmatpush1.bf16.msra.mxu0 %v52
  %71 = vmatprep.subr.bf16.mxu0 %v67
  %72 = vmatpush1.bf16.msra.mxu0 %v64
  %73 = vmatprep.subr.bf16.mxu0 0
  %74 = vmatpush1.bf16.msra.mxu0 0
  %75 = vmatprep.subr.bf16.mxu0 0
  %76 = vmatpush1.bf16.msra.mxu0 0
  %77 = vmatprep.subr.bf16.mxu0 0
  %78 = vmatpush1.bf16.msra.mxu0 0
  %79 = vmatprep.subr.bf16.mxu0 0
  %80 = vmatpush1.bf16.msra.mxu0 0
  %81 = vmatprep.subr.bf16.mxu0 0
  %82 = vmatpush1.bf16.msra.mxu0 0
  %83 = vmatprep.subr.bf16.mxu0 0
  %84 = vmatpush1.bf16.msra.mxu0 0
  %85 = vmatprep.subr.bf16.mxu0 0
  %86 = vmatpush1.bf16.msra.mxu0 0
  %87 = vmatprep.subr.bf16.mxu0 0
  %88 = vmatpush1.bf16.msra.mxu0 0
  %89 = vmatprep.subr.bf16.mxu0 0
  %90 = vmatpush1.bf16.msra.mxu0 0
  %91 = vmatprep.subr.bf16.mxu0 0
  %92 = vmatpush1.bf16.msra.mxu0 0
  %93 = vmatprep.subr.bf16.mxu0 0
  %94 = vmatpush1.bf16.msra.mxu0 0
  %95 = vmatprep.subr.bf16.mxu0 0
  %96 = vmatpush1.bf16.msra.mxu0 0
  %97 = vmatprep.subr.bf16.mxu0 0
  %98 = vmatpush1.bf16.msra.mxu0 0
  %99 = vmatprep.subr.bf16.mxu0 0
  %100 = vmatpush1.bf16.msra.mxu0 0
  %101 = vmatprep.mubr.bf16.mxu0 0
  %102 = vmatmul.mubr.bf16.gmra.mrb[0].mxu0 %v60
  %v103 = vpop.f32.mrb[0].mxu0
  %v104 = vadd.f32 %v31, %v103
  %v105 = vpop.f32.mrb[0].mxu0
  %v106 = vadd.f32 %v35, %v105
  %v107 = vpop.f32.mrb[0].mxu0
  %v108 = vadd.f32 %v31, %v107
  %v109 = vpop.f32.mrb[0].mxu0
  %v110 = vadd.f32 %v35, %v109
  %111 = vdwg.mxu0
  %v112 = vmax.f32 %v104, 0.0
  %v113 = vmax.f32 %v106, 0.0
  %v114 = vmax.f32 %v108, 0.0
  %v115 = vmax.f32 %v110, 0.0
  %v116 = vpack.c.bf16 %v114, %v112
  %v117 = vpack.c.bf16 %v115, %v113
  %v118 = vld [vmem:[%s3] sm:$0xf]
  %v119 = vld [vmem:[%s3 + $0x4] sm:$0xf]
  %v120 = vld [vmem:[%s3 + $0x8] sm:$0xf]
  %v121 = vld [vmem:[%s3 + $0xc] sm:$0xf]
  %v122 = vld [vmem:[%s3 + $0x10] sm:$0xf]
  %v123 = vld [vmem:[%s3 + $0x14] sm:$0xf]
  %v124 = vld [vmem:[%s3 + $0x18] sm:$0xf]
  %v125 = vld [vmem:[%s3 + $0x1c] sm:$0xf]
  %v126 = vld [vmem:[%s3 + $0x20] sm:$0xf]
  %v127 = vld [vmem:[%s3 + $0x24] sm:$0xf]
  %v128 = vld [vmem:[%s3 + $0x28] sm:$0xf]
  %v129 = vld [vmem:[%s3 + $0x2c] sm:$0xf]
  %v130 = vld [vmem:[%s3 + $0x30] sm:$0xf]
  %v131 = vld [vmem:[%s3 + $0x34] sm:$0xf]
  %v132 = vld [vmem:[%s3 + $0x38] sm:$0xf]
  %v133 = vld [vmem:[%s3 + $0x3c] sm:$0xf]
  %v134 = vld [vmem:[%s3 + $0x40] sm:$0xf]
  %v135 = vld [vmem:[%s3 + $0x44] sm:$0xf]
  %v136 = vld [vmem:[%s3 + $0x48] sm:$0xf]
  %v137 = vld [vmem:[%s3 + $0x4c] sm:$0xf]
  %v138 = vld [vmem:[%s3 + $0x50] sm:$0xf]
  %v139 = vld [vmem:[%s3 + $0x54] sm:$0xf]
  %v140 = vld [vmem:[%s3 + $0x58] sm:$0xf]
  %v141 = vld [vmem:[%s3 + $0x5c] sm:$0xf]
  %v142 = vld [vmem:[%s3 + $0x60] sm:$0xf]
  %v143 = vld [vmem:[%s3 + $0x64] sm:$0xf]
  %v144 = vld [vmem:[%s3 + $0x68] sm:$0xf]
  %v145 = vld [vmem:[%s3 + $0x6c] sm:$0xf]
  %v146 = vld [vmem:[%s3 + $0x70] sm:$0xf]
  %v147 = vld [vmem:[%s3 + $0x74] sm:$0xf]
  %v148 = vld [vmem:[%s3 + $0x78] sm:$0xf]
  %v149 = vld [vmem:[%s3 + $0x7c] sm:$0xf]
  %v150 = vld [vmem:[%s4] sm:$0x1]
  %v152 = vlaneseq
  %v153 = vshrl.u32 %v152, 7
  %v154 = vsub.s32 0, %v153
  %v155 = vrot.slane %v150, %v154
  %v189 = vunpack.c.l.b16 %v118
  %v190 = vunpack.c.l.b16 %v119
  %v191 = vunpack.c.l.b16 %v120
  %v192 = vunpack.c.l.b16 %v121
  %v193 = vunpack.c.l.b16 %v122
  %v194 = vunpack.c.l.b16 %v123
  %v195 = vunpack.c.l.b16 %v124
  %v196 = vunpack.c.l.b16 %v125
  %v197 = vunpack.c.l.b16 %v126
  %v198 = vunpack.c.l.b16 %v127
  %v199 = vunpack.c.l.b16 %v128
  %v200 = vunpack.c.l.b16 %v129
  %v201 = vunpack.c.l.b16 %v130
  %v202 = vunpack.c.l.b16 %v131
  %v203 = vunpack.c.l.b16 %v132
  %v204 = vunpack.c.l.b16 %v133
  %v205 = vunpack.c.l.b16 %v134
  %v206 = vunpack.c.l.b16 %v135
  %v207 = vunpack.c.l.b16 %v136
  %v208 = vunpack.c.l.b16 %v137
  %v209 = vunpack.c.l.b16 %v138
  %v210 = vunpack.c.l.b16 %v139
  %v211 = vunpack.c.l.b16 %v140
  %v212 = vunpack.c.l.b16 %v141
  %v213 = vunpack.c.l.b16 %v142
  %v214 = vunpack.c.l.b16 %v143
  %v215 = vunpack.c.l.b16 %v144
  %v216 = vunpack.c.l.b16 %v145
  %v217 = vunpack.c.l.b16 %v146
  %v218 = vunpack.c.l.b16 %v147
  %v219 = vunpack.c.l.b16 %v148
  %v220 = vunpack.c.l.b16 %v149
  %v221 = vpack.c.b16 %v190, %v189
  %v222 = vpack.c.b16 %v192, %v191
  %v223 = vpack.c.b16 %v194, %v193
  %v224 = vpack.c.b16 %v196, %v195
  %v225 = vpack.c.b16 %v198, %v197
  %v226 = vpack.c.b16 %v200, %v199
  %v227 = vpack.c.b16 %v202, %v201
  %v228 = vpack.c.b16 %v204, %v203
  %v229 = vpack.c.b16 %v206, %v205
  %v230 = vpack.c.b16 %v208, %v207
  %v231 = vpack.c.b16 %v210, %v209
  %v232 = vpack.c.b16 %v212, %v211
  %v233 = vpack.c.b16 %v214, %v213
  %v234 = vpack.c.b16 %v216, %v215
  %v235 = vpack.c.b16 %v218, %v217
  %v236 = vpack.c.b16 %v220, %v219
  %253 = vmatprep.subr.bf16.mxu0 0
  %254 = vmatpush1.bf16.msra.mxu0 %v221
  %255 = vmatprep.subr.bf16.mxu0 0
  %256 = vmatpush1.bf16.msra.mxu0 %v222
  %257 = vmatprep.subr.bf16.mxu0 0
  %258 = vmatpush1.bf16.msra.mxu0 %v223
  %259 = vmatprep.subr.bf16.mxu0 0
  %260 = vmatpush1.bf16.msra.mxu0 %v224
  %261 = vmatprep.subr.bf16.mxu0 0
  %262 = vmatpush1.bf16.msra.mxu0 %v225
  %263 = vmatprep.subr.bf16.mxu0 0
  %264 = vmatpush1.bf16.msra.mxu0 %v226
  %265 = vmatprep.subr.bf16.mxu0 0
  %266 = vmatpush1.bf16.msra.mxu0 %v227
  %267 = vmatprep.subr.bf16.mxu0 0
  %268 = vmatpush1.bf16.msra.mxu0 %v228
  %269 = vmatprep.subr.bf16.mxu0 0
  %270 = vmatpush1.bf16.msra.mxu0 %v229
  %271 = vmatprep.subr.bf16.mxu0 0
  %272 = vmatpush1.bf16.msra.mxu0 %v230
  %273 = vmatprep.subr.bf16.mxu0 0
  %274 = vmatpush1.bf16.msra.mxu0 %v231
  %275 = vmatprep.subr.bf16.mxu0 0
  %276 = vmatpush1.bf16.msra.mxu0 %v232
  %277 = vmatprep.subr.bf16.mxu0 0
  %278 = vmatpush1.bf16.msra.mxu0 %v233
  %279 = vmatprep.subr.bf16.mxu0 0
  %280 = vmatpush1.bf16.msra.mxu0 %v234
  %281 = vmatprep.subr.bf16.mxu0 0
  %282 = vmatpush1.bf16.msra.mxu0 %v235
  %283 = vmatprep.subr.bf16.mxu0 0
  %284 = vmatpush1.bf16.msra.mxu0 %v236
  %285 = vmatprep.mubr.bf16.mxu0 %v117
  %286 = vmatmul.mubr.bf16.gmra.mrb[0].mxu0 %v116
  %v287 = vpop.f32.mrb[0].mxu0
  %v288 = vadd.f32 %v155, %v287
  %v289 = vpop.f32.mrb[0].mxu0
  %v290 = vpop.f32.mrb[0].mxu0
  %v291 = vadd.f32 %v155, %v290
  %v292 = vpop.f32.mrb[0].mxu0
  %293 = vdwg.mxu0
  %294 = vst [vmem:[%s5] sm:$0xff] %v288
  %295 = vst [vmem:[%s5 + $0x8] sm:$0xff] %v291
  // Predicated region
  $region22: #{mlp_forward.1} parent=0 // pred_check
    _
  $region23: #{mlp_forward.1} parent=0 // pred_check_branch
    %297 = sbr.rel (0) target = $region25
  $region24: #{mlp_forward.1} parent=0 // pred_region
    _
  $region25: #{mlp_forward.1} parent=0 // pred_fallthru
    _
  // Predicated region
  $region26: #{mlp_forward.1} parent=0 // pred_check
    _
  $region27: #{mlp_forward.1} parent=0 // pred_check_branch
    %299 = sbr.rel (0) target = $region29
  $region28: #{mlp_forward.1} parent=0 // pred_region
    _
  $region29: #{mlp_forward.1} parent=0 // pred_fallthru
    _

</llo_original>
